<compile_context>
chip_gen: v6e
topology: v6e:2x2x1
jax: 0.10.0
libtpu: 0.0.40
codegen_flags: <defaults>
</compile_context>

<pallas_src>
import numpy as np
import jax
import jax.numpy as jnp
from jax.experimental import pallas as pl
from jax.experimental.pallas import tpu as pltpu


def _dft2_block_operator(H, W):
    """Real block form of the orthonormal 2-D DFT on row-major flattened (h, w).

    Returns W_blk of shape (2*H*W, 2*H*W) such that, with row vectors [yr | yi]:
        [yr | yi] @ W_blk = [zr | zi],   z = ortho-FFT2(y).
    """
    def dft(n):
        j = np.arange(n)
        return np.exp(-2j * np.pi * np.outer(j, j) / n) / np.sqrt(n)

    m_t = np.kron(dft(H), dft(W)).T                    # M^T, (HW, HW), complex128
    wr, wi = m_t.real, m_t.imag
    return np.block([[wr, wi], [-wi, wr]]).astype(np.float32)   # (2HW, 2HW)


def _sense_forw_kernel(x_ref, m_ref, mask_ref, w_ref, o_ref):
    # One row-block of the fused (B*C, 2*HW) problem.  All slices are static and
    # lane-aligned (HW is a multiple of 128 for the shapes of interest).
    hw = x_ref.shape[-1] // 2
    xr, xi = x_ref[:, :hw], x_ref[:, hw:]              # (Mb, HW)
    mr, mi = m_ref[:, :hw], m_ref[:, hw:]              # (Mb, HW)

    # maps_forw: complex elementwise multiply (VPU), broadcast already folded into rows.
    yr = xr * mr - xi * mi
    yi = xr * mi + xi * mr

    # fft_forw: single real block matmul -> [zr | zi] lane-contiguous (one MXU RHS push).
    y = jnp.concatenate([yr, yi], axis=-1).astype(w_ref.dtype)       # (Mb, 2HW)
    z = jnp.dot(y, w_ref[...], preferred_element_type=jnp.float32)   # (Mb, 2HW)

    # mask_forw: sampling mask (pre-tiled over coils and both lane halves).
    o_ref[...] = z * mask_ref[...]                     # full-tile unmasked store


def sense_forward_planar(x_re, x_im, maps_re, maps_im, mask, *, m_block=None,
                         operator_dtype=jnp.float32):
    """SENSE forward on planar re/im inputs (no de-interleave passes in this path).

    x_re, x_im : (B, H, W)        maps_re, maps_im : (B, C, H, W)        mask : (B, H, W)
    returns (B, C, 2, H, W) float32  -- a free contiguous reshape of the kernel's
    lane-dense (B*C, 2*H*W) output.
    """
    B, C, H, W = maps_re.shape
    HW = H * W
    M_total = B * C
    f32 = jnp.float32

    if m_block is None:
        # Prefer 2 parallel grid steps when they tile cleanly (keeps both v7x TensorCores
        # busy); otherwise a single step (v5e/v6e: one RHS push, no per-step overhead).
        half = M_total // 2
        m_block = half if (M_total % 2 == 0 and half % 8 == 0) else M_total
    assert M_total % m_block == 0 and (m_block == M_total or m_block % 8 == 0)
    n_mb = M_total // m_block

    # Lane-dense [re | im] rows; batch and coil folded into the matmul M dimension.
    x2 = jnp.broadcast_to(
        jnp.concatenate([x_re.reshape(B, 1, HW), x_im.reshape(B, 1, HW)],
                        axis=-1).astype(f32),
        (B, C, 2 * HW)).reshape(M_total, 2 * HW)
    m2 = jnp.concatenate([maps_re.reshape(B, C, HW), maps_im.reshape(B, C, HW)],
                         axis=-1).astype(f32).reshape(M_total, 2 * HW)
    mask2 = jnp.broadcast_to(mask.reshape(B, 1, 1, HW).astype(f32),
                             (B, C, 2, HW)).reshape(M_total, 2 * HW)

    w_blk = jnp.asarray(_dft2_block_operator(H, W), dtype=operator_dtype)

    row_spec = pl.BlockSpec((m_block, 2 * HW), lambda i: (i, 0))
    # Constant index_map -> operator is fetched once and stays resident across steps.
    w_spec = pl.BlockSpec((2 * HW, 2 * HW), lambda i: (0, 0))

    out = pl.pallas_call(
        _sense_forw_kernel,
        out_shape=jax.ShapeDtypeStruct((M_total, 2 * HW), f32),
        grid_spec=pltpu.PrefetchScalarGridSpec(
            num_scalar_prefetch=0,
            grid=(n_mb,),
            in_specs=[row_spec, row_spec, row_spec, w_spec],
            out_specs=row_spec,
        ),
        compiler_params=pltpu.CompilerParams(dimension_semantics=("parallel",)),
    )(x2, m2, mask2, w_blk)

    return out.reshape(B, C, 2, H, W)


def sense_forward(x, maps, mask, **kw):
    """Torch-layout SENSE forward: x (B,H,W,2), maps (B,C,H,W,2), mask (B,H,W) -> (B,C,H,W,2).

    De-interleaves re/im with a single transpose per input and re-interleaves the output
    once.  Pipelines that can stay planar should call sense_forward_planar directly and
    skip these extra HBM passes.
    """
    x_p = jnp.moveaxis(x, -1, 1)            # (B, 2, H, W)
    maps_p = jnp.moveaxis(maps, -1, 2)      # (B, C, 2, H, W)
    out_p = sense_forward_planar(x_p[:, 0], x_p[:, 1],
                                 maps_p[:, :, 0], maps_p[:, :, 1], mask, **kw)
    return jnp.moveaxis(out_p, 2, -1)       # (B, C, H, W, 2)


def _reference(x, maps, mask):
    """Pure-JAX reference mirroring the torch semantics (normalized 2-D FFT)."""
    xc = x[..., 0] + 1j * x[..., 1]                     # (B, H, W)
    mc = maps[..., 0] + 1j * maps[..., 1]               # (B, C, H, W)
    y = xc[:, None, ...] * mc                           # maps_forw
    k = jnp.fft.fft2(y, axes=(-2, -1), norm="ortho")    # fft_forw (normalized)
    k = k * mask[:, None, :, :]                         # mask_forw
    return jnp.stack((jnp.real(k), jnp.imag(k)), axis=-1).astype(jnp.float32)


if __name__ == "__main__":
    B, C, H, W = 2, 4, 16, 16
    kx, km, kk = jax.random.split(jax.random.PRNGKey(0), 3)
    x = jax.random.normal(kx, (B, H, W, 2), dtype=jnp.float32)
    maps = jax.random.normal(km, (B, C, H, W, 2), dtype=jnp.float32)
    mask = (jax.random.uniform(kk, (B, H, W)) > 0.5).astype(jnp.float32)

    out = jax.block_until_ready(sense_forward(x, maps, mask))

    ref = _reference(x, maps, mask)
    np.testing.assert_allclose(np.asarray(out), np.asarray(ref), rtol=1e-4, atol=1e-4)
    print("KERNEL_OK")
</pallas_src>

<mosaic_0001>
module attributes {stable_mosaic.version = 11 : i64} {
  func.func @_sense_forw_kernel(%arg0: i32, %arg1: memref<8x512xf32, #tpu.memory_space<vmem>>, %arg2: memref<8x512xf32, #tpu.memory_space<vmem>>, %arg3: memref<8x512xf32, #tpu.memory_space<vmem>>, %arg4: memref<512x512xf32, #tpu.memory_space<vmem>>, %arg5: memref<8x512xf32, #tpu.memory_space<vmem>>) attributes {dimension_semantics = [#tpu.dimension_semantics<parallel>], iteration_bounds = array<i64: 1>, scalar_prefetch = 0 : i64, scratch_operands = 0 : i64, tpu.core_type = #tpu.core_type<tc>, window_params = [{transform_indices = @transform_0, window_bounds = array<i64: 8, 512>}, {transform_indices = @transform_1, window_bounds = array<i64: 8, 512>}, {transform_indices = @transform_2, window_bounds = array<i64: 8, 512>}, {pipeline_mode = #tpu.pipeline_mode<synchronous>, transform_indices = @transform_3, window_bounds = array<i64: 512, 512>}, {transform_indices = @transform_4, window_bounds = array<i64: 8, 512>}]} {
    %c0 = arith.constant 0 : index
    %c0_0 = arith.constant 0 : index
    %0 = vector.load %arg1[%c0, %c0_0] : memref<8x512xf32, #tpu.memory_space<vmem>>, vector<8x256xf32>
    %c0_1 = arith.constant 0 : index
    %c256 = arith.constant 256 : index
    %1 = vector.load %arg1[%c0_1, %c256] : memref<8x512xf32, #tpu.memory_space<vmem>>, vector<8x256xf32>
    %c0_2 = arith.constant 0 : index
    %c0_3 = arith.constant 0 : index
    %2 = vector.load %arg2[%c0_2, %c0_3] : memref<8x512xf32, #tpu.memory_space<vmem>>, vector<8x256xf32>
    %c0_4 = arith.constant 0 : index
    %c256_5 = arith.constant 256 : index
    %3 = vector.load %arg2[%c0_4, %c256_5] : memref<8x512xf32, #tpu.memory_space<vmem>>, vector<8x256xf32>
    %4 = arith.mulf %0, %2 : vector<8x256xf32>
    %5 = arith.mulf %1, %3 : vector<8x256xf32>
    %6 = arith.subf %4, %5 : vector<8x256xf32>
    %7 = arith.mulf %0, %3 : vector<8x256xf32>
    %8 = arith.mulf %1, %2 : vector<8x256xf32>
    %9 = arith.addf %7, %8 : vector<8x256xf32>
    %10 = tpu.concatenate %6, %9 in 1 : vector<8x256xf32>, vector<8x256xf32> -> vector<8x512xf32>
    %c0_6 = arith.constant 0 : index
    %c0_7 = arith.constant 0 : index
    %11 = vector.load %arg4[%c0_6, %c0_7] : memref<512x512xf32, #tpu.memory_space<vmem>>, vector<512x512xf32>
    %cst = arith.constant dense<0.000000e+00> : vector<8x512xf32>
    %12 = tpu.matmul %10, %11, %cst {dimension_numbers = #tpu.dot_dimension_numbers<[1], [0], [0], [1], [0, 0, 1, 1], [], []>} : vector<8x512xf32>, vector<512x512xf32>, vector<8x512xf32> -> vector<8x512xf32>
    %c0_8 = arith.constant 0 : index
    %c0_9 = arith.constant 0 : index
    %13 = vector.load %arg3[%c0_8, %c0_9] : memref<8x512xf32, #tpu.memory_space<vmem>>, vector<8x512xf32>
    %14 = arith.mulf %12, %13 : vector<8x512xf32>
    %c0_10 = arith.constant 0 : index
    %c0_11 = arith.constant 0 : index
    %15 = vector.load %arg5[%c0_10, %c0_11] : memref<8x512xf32, #tpu.memory_space<vmem>>, vector<8x512xf32>
    tpu.vector_store %arg5[%c0_10, %c0_11], %14 {strides = array<i32>} : memref<8x512xf32, #tpu.memory_space<vmem>>, vector<8x512xf32>,
    return
  }
  func.func @transform_0(%arg0: i32) -> (i32, i32) {
    %c0_i32 = arith.constant 0 : i32
    %c0_i32_0 = arith.constant 0 : i32
    return %arg0, %c0_i32 : i32, i32
  }
  func.func @transform_1(%arg0: i32) -> (i32, i32) {
    %c0_i32 = arith.constant 0 : i32
    %c0_i32_0 = arith.constant 0 : i32
    return %arg0, %c0_i32 : i32, i32
  }
  func.func @transform_2(%arg0: i32) -> (i32, i32) {
    %c0_i32 = arith.constant 0 : i32
    %c0_i32_0 = arith.constant 0 : i32
    return %arg0, %c0_i32 : i32, i32
  }
  func.func @transform_3(%arg0: i32) -> (i32, i32) {
    %c0_i32 = arith.constant 0 : i32
    %c0_i32_0 = arith.constant 0 : i32
    %c0_i32_1 = arith.constant 0 : i32
    return %c0_i32, %c0_i32_0 : i32, i32
  }
  func.func @transform_4(%arg0: i32) -> (i32, i32) {
    %c0_i32 = arith.constant 0 : i32
    %c0_i32_0 = arith.constant 0 : i32
    return %arg0, %c0_i32 : i32, i32
  }
}

</mosaic_0001>

<llo_original>
// kernel: tpu_custom_call.1
$region0: #{tpu_custom_call.1}
  #allocation0 [shape = 'u32[]', space=smem, size = 0x4, offset = 0x4, fixed_abs, tag = 'smem constant byte address 0x4 - core index']
  #allocation1 [shape = 'u32[144,128]{1,0:T(1,128)}', space=vmem, size = 0x12000, scoped, tag = 'internal scratch']
  %s0 = inlined_call_operand.hbm [shape: f32[8,512], index: 0, kind: input, shape index: {}]
  %s1 = inlined_call_operand.hbm [shape: f32[8,512], index: 1, kind: input, shape index: {}]
  %s2 = inlined_call_operand.hbm [shape: f32[8,512], index: 2, kind: input, shape index: {}]
  %s3 = inlined_call_operand.hbm [shape: f32[512,512], index: 3, kind: input, shape index: {}]
  %s4 = inlined_call_operand.hbm [shape: f32[8,512], index: 4, kind: output, shape index: {}]
  %s5 = sld [smem:[#allocation0]]
  $region42: #{tpu_custom_call.1} parent=0
    _
  %s7 = ssub.s32 1, %s5
  %s8 = scalar_select 0, %s7, %s5
  $region1: #{tpu_custom_call.1} parent=0
    #allocation2 [shape = 'u8[16384]{0}', space=vmem, size = 0x4000, scoped, tag = 'input window, operand 0, single buffered']
    #allocation3 [shape = 's32[1]{0}', space=sflag, size = 0x4, scoped, tag = 'scoped memory for tpu_custom_call.1']
    #allocation4 [shape = 's32[1]{0}', space=sflag, size = 0x4, scoped, tag = 'scoped memory for tpu_custom_call.1']
    #allocation5 [shape = 'u8[16384]{0}', space=vmem, size = 0x4000, scoped, tag = 'input window, operand 1, single buffered']
    #allocation6 [shape = 's32[1]{0}', space=sflag, size = 0x4, scoped, tag = 'scoped memory for tpu_custom_call.1']
    #allocation7 [shape = 'u8[16384]{0}', space=vmem, size = 0x4000, scoped, tag = 'input window, operand 2, single buffered']
    #allocation8 [shape = 'u8[1048576]{0}', space=vmem, size = 0x100000, scoped, tag = 'input window, operand 3, single buffered']
    #allocation9 [shape = 's32[1]{0}', space=sflag, size = 0x4, scoped, tag = 'scoped memory for tpu_custom_call.1']
    #allocation10 [shape = 'u8[16384]{0}', space=vmem, size = 0x4000, scoped, tag = 'output window, operand 0, single buffered']
    %9 = vsyncpa [#allocation3], 0
    %10 = vsyncpa [#allocation6], 0
    %11 = vsyncpa [#allocation9], 0
    %12 = vsyncpa [#allocation4], 0
    // Predicated region
    $region2: #{tpu_custom_call.1} parent=1 // pred_check
      _
    $region3: #{tpu_custom_call.1} parent=1 // pred_check_branch
      %14 = sbr.rel (0) target = $region5
    $region4: #{tpu_custom_call.1} parent=1 // pred_region
      %s16 = ssub.s32 512, 512
      %17 = vsyncadd [#allocation3], %s16
      %s19 = sshll.u32 [#allocation2], 4
      %s20 = int_to_ptr.vmem [resolvable:$true] %s19
      %22 = dma.hbm_to_vmem [thread:$0]  %s0, 512, %s20, [#allocation3]
    $region5: #{tpu_custom_call.1} parent=1 // pred_fallthru
      _
    // Predicated region
    $region6: #{tpu_custom_call.1} parent=1 // pred_check
      _
    $region7: #{tpu_custom_call.1} parent=1 // pred_check_branch
      %24 = sbr.rel (0) target = $region9
    $region8: #{tpu_custom_call.1} parent=1 // pred_region
      %s26 = ssub.s32 512, 512
      %27 = vsyncadd [#allocation6], %s26
      %s29 = sshll.u32 [#allocation5], 4
      %s30 = int_to_ptr.vmem [resolvable:$true] %s29
      %32 = dma.hbm_to_vmem [thread:$0]  %s1, 512, %s30, [#allocation6]
    $region9: #{tpu_custom_call.1} parent=1 // pred_fallthru
      _
    // Predicated region
    $region10: #{tpu_custom_call.1} parent=1 // pred_check
      _
    $region11: #{tpu_custom_call.1} parent=1 // pred_check_branch
      %34 = sbr.rel (0) target = $region13
    $region12: #{tpu_custom_call.1} parent=1 // pred_region
      %s36 = ssub.s32 512, 512
      %37 = vsyncadd [#allocation6], %s36
      %s39 = sshll.u32 [#allocation7], 4
      %s40 = int_to_ptr.vmem [resolvable:$true] %s39
      %42 = dma.hbm_to_vmem [thread:$0]  %s2, 512, %s40, [#allocation6]
    $region13: #{tpu_custom_call.1} parent=1 // pred_fallthru
      _
    // Predicated region
    $region14: #{tpu_custom_call.1} parent=1 // pred_check
      _
    $region15: #{tpu_custom_call.1} parent=1 // pred_check_branch
      %44 = sbr.rel (0) target = $region17
    $region16: #{tpu_custom_call.1} parent=1 // pred_region
      %s46 = ssub.s32 32768, 32768
      %47 = vsyncadd [#allocation9], %s46
      %s48 = sshll.u32 [#allocation8], 4
      %s49 = int_to_ptr.vmem [resolvable:$true] %s48
      %54 = dma.hbm_to_vmem [thread:$0]  %s3, 32768, %s49, [#allocation9], 512, 512, 32
    $region17: #{tpu_custom_call.1} parent=1 // pred_fallthru
      _
    // Predicated region
    $region18: #{tpu_custom_call.1} parent=1 // pred_check
      _
    $region19: #{tpu_custom_call.1} parent=1 // pred_check_branch
      %56 = sbr.rel (0) target = $region21
    $region20: #{tpu_custom_call.1} parent=1 // pred_region
      %57 = dma.done [#allocation3], 512
    $region21: #{tpu_custom_call.1} parent=1 // pred_fallthru
      _
    // Predicated region
    $region22: #{tpu_custom_call.1} parent=1 // pred_check
      _
    $region23: #{tpu_custom_call.1} parent=1 // pred_check_branch
      %59 = sbr.rel (0) target = $region25
    $region24: #{tpu_custom_call.1} parent=1 // pred_region
      %60 = dma.done [#allocation6], 512
    $region25: #{tpu_custom_call.1} parent=1 // pred_fallthru
      _
    // Predicated region
    $region26: #{tpu_custom_call.1} parent=1 // pred_check
      _
    $region27: #{tpu_custom_call.1} parent=1 // pred_check_branch
      %62 = sbr.rel (0) target = $region29
    $region28: #{tpu_custom_call.1} parent=1 // pred_region
      %63 = dma.done [#allocation6], 512
    $region29: #{tpu_custom_call.1} parent=1 // pred_fallthru
      _
    // Predicated region
    $region30: #{tpu_custom_call.1} parent=1 // pred_check
      _
    $region31: #{tpu_custom_call.1} parent=1 // pred_check_branch
      %65 = sbr.rel (0) target = $region33
    $region32: #{tpu_custom_call.1} parent=1 // pred_region
      %66 = dma.done [#allocation9], 32768
    $region33: #{tpu_custom_call.1} parent=1 // pred_fallthru
      _
    %v67 = vld [vmem:[#allocation2] sm:$0xff]
    %v68 = vld [vmem:[#allocation2 + $0x8] sm:$0xff]
    %v69 = vld [vmem:[#allocation2 + $0x10] sm:$0xff]
    %v70 = vld [vmem:[#allocation2 + $0x18] sm:$0xff]
    %v71 = vld [vmem:[#allocation5] sm:$0xff]
    %v72 = vld [vmem:[#allocation5 + $0x8] sm:$0xff]
    %v73 = vld [vmem:[#allocation5 + $0x10] sm:$0xff]
    %v74 = vld [vmem:[#allocation5 + $0x18] sm:$0xff]
    %v75 = vmul.f32 %v67, %v71
    %v76 = vmul.f32 %v68, %v72
    %v77 = vmul.f32 %v69, %v73
    %v78 = vmul.f32 %v70, %v74
    %v79 = vsub.f32 %v75, %v77
    %v80 = vsub.f32 %v76, %v78
    %v81 = vmul.f32 %v67, %v73
    %v82 = vmul.f32 %v68, %v74
    %v83 = vmul.f32 %v69, %v71
    %v84 = vmul.f32 %v70, %v72
    %v85 = vadd.f32 %v81, %v83
    %v86 = vadd.f32 %v82, %v84
    %v87 = vld [vmem:[#allocation8] sm:$0xff]
    %v88 = vld [vmem:[#allocation8 + $0x8] sm:$0xff]
    %v89 = vld [vmem:[#allocation8 + $0x10] sm:$0xff]
    %v90 = vld [vmem:[#allocation8 + $0x18] sm:$0xff]
    %v91 = vld [vmem:[#allocation8 + $0x20] sm:$0xff]
    %v92 = vld [vmem:[#allocation8 + $0x28] sm:$0xff]
    %v93 = vld [vmem:[#allocation8 + $0x30] sm:$0xff]
    %v94 = vld [vmem:[#allocation8 + $0x38] sm:$0xff]
    %v95 = vld [vmem:[#allocation8 + $0x40] sm:$0xff]
    %v96 = vld [vmem:[#allocation8 + $0x48] sm:$0xff]
    %v97 = vld [vmem:[#allocation8 + $0x50] sm:$0xff]
    %v98 = vld [vmem:[#allocation8 + $0x58] sm:$0xff]
    %v99 = vld [vmem:[#allocation8 + $0x60] sm:$0xff]
    %v100 = vld [vmem:[#allocation8 + $0x68] sm:$0xff]
    %v101 = vld [vmem:[#allocation8 + $0x70] sm:$0xff]
    %v102 = vld [vmem:[#allocation8 + $0x78] sm:$0xff]
    %v103 = vld [vmem:[#allocation8 + $0x80] sm:$0xff]
    %v104 = vld [vmem:[#allocation8 + $0x88] sm:$0xff]
    %v105 = vld [vmem:[#allocation8 + $0x90] sm:$0xff]
    %v106 = vld [vmem:[#allocation8 + $0x98] sm:$0xff]
    %v107 = vld [vmem:[#allocation8 + $0xa0] sm:$0xff]
    %v108 = vld [vmem:[#allocation8 + $0xa8] sm:$0xff]
    %v109 = vld [vmem:[#allocation8 + $0xb0] sm:$0xff]
    %v110 = vld [vmem:[#allocation8 + $0xb8] sm:$0xff]
    %v111 = vld [vmem:[#allocation8 + $0xc0] sm:$0xff]
    %v112 = vld [vmem:[#allocation8 + $0xc8] sm:$0xff]
    %v113 = vld [vmem:[#allocation8 + $0xd0] sm:$0xff]
    %v114 = vld [vmem:[#allocation8 + $0xd8] sm:$0xff]
    %v115 = vld [vmem:[#allocation8 + $0xe0] sm:$0xff]
    %v116 = vld [vmem:[#allocation8 + $0xe8] sm:$0xff]
    %v117 = vld [vmem:[#allocation8 + $0xf0] sm:$0xff]
    %v118 = vld [vmem:[#allocation8 + $0xf8] sm:$0xff]
    %v119 = vld [vmem:[#allocation8 + $0x100] sm:$0xff]
    %v120 = vld [vmem:[#allocation8 + $0x108] sm:$0xff]
    %v121 = vld [vmem:[#allocation8 + $0x110] sm:$0xff]
    %v122 = vld [vmem:[#allocation8 + $0x118] sm:$0xff]
    %v123 = vld [vmem:[#allocation8 + $0x120] sm:$0xff]
    %v124 = vld [vmem:[#allocation8 + $0x128] sm:$0xff]
    %v125 = vld [vmem:[#allocation8 + $0x130] sm:$0xff]
    %v126 = vld [vmem:[#allocation8 + $0x138] sm:$0xff]
    %v127 = vld [vmem:[#allocation8 + $0x140] sm:$0xff]
    %v128 = vld [vmem:[#allocation8 + $0x148] sm:$0xff]
    %v129 = vld [vmem:[#allocation8 + $0x150] sm:$0xff]
    %v130 = vld [vmem:[#allocation8 + $0x158] sm:$0xff]
    %v131 = vld [vmem:[#allocation8 + $0x160] sm:$0xff]
    %v132 = vld [vmem:[#allocation8 + $0x168] sm:$0xff]
    %v133 = vld [vmem:[#allocation8 + $0x170] sm:$0xff]
    %v134 = vld [vmem:[#allocation8 + $0x178] sm:$0xff]
    %v135 = vld [vmem:[#allocation8 + $0x180] sm:$0xff]
    %v136 = vld [vmem:[#allocation8 + $0x188] sm:$0xff]
    %v137 = vld [vmem:[#allocation8 + $0x190] sm:$0xff]
    %v138 = vld [vmem:[#allocation8 + $0x198] sm:$0xff]
    %v139 = vld [vmem:[#allocation8 + $0x1a0] sm:$0xff]
    %v140 = vld [vmem:[#allocation8 + $0x1a8] sm:$0xff]
    %v141 = vld [vmem:[#allocation8 + $0x1b0] sm:$0xff]
    %v142 = vld [vmem:[#allocation8 + $0x1b8] sm:$0xff]
    %v143 = vld [vmem:[#allocation8 + $0x1c0] sm:$0xff]
    %v144 = vld [vmem:[#allocation8 + $0x1c8] sm:$0xff]
    %v145 = vld [vmem:[#allocation8 + $0x1d0] sm:$0xff]
    %v146 = vld [vmem:[#allocation8 + $0x1d8] sm:$0xff]
    %v147 = vld [vmem:[#allocation8 + $0x1e0] sm:$0xff]
    %v148 = vld [vmem:[#allocation8 + $0x1e8] sm:$0xff]
    %v149 = vld [vmem:[#allocation8 + $0x1f0] sm:$0xff]
    %v150 = vld [vmem:[#allocation8 + $0x1f8] sm:$0xff]
    %v151 = vld [vmem:[#allocation8 + $0x200] sm:$0xff]
    %v152 = vld [vmem:[#allocation8 + $0x208] sm:$0xff]
    %v153 = vld [vmem:[#allocation8 + $0x210] sm:$0xff]
    %v154 = vld [vmem:[#allocation8 + $0x218] sm:$0xff]
    %v155 = vld [vmem:[#allocation8 + $0x220] sm:$0xff]
    %v156 = vld [vmem:[#allocation8 + $0x228] sm:$0xff]
    %v157 = vld [vmem:[#allocation8 + $0x230] sm:$0xff]
    %v158 = vld [vmem:[#allocation8 + $0x238] sm:$0xff]
    %v159 = vld [vmem:[#allocation8 + $0x240] sm:$0xff]
    %v160 = vld [vmem:[#allocation8 + $0x248] sm:$0xff]
    %v161 = vld [vmem:[#allocation8 + $0x250] sm:$0xff]
    %v162 = vld [vmem:[#allocation8 + $0x258] sm:$0xff]
    %v163 = vld [vmem:[#allocation8 + $0x260] sm:$0xff]
    %v164 = vld [vmem:[#allocation8 + $0x268] sm:$0xff]
    %v165 = vld [vmem:[#allocation8 + $0x270] sm:$0xff]
    %v166 = vld [vmem:[#allocation8 + $0x278] sm:$0xff]
    %v167 = vld [vmem:[#allocation8 + $0x280] sm:$0xff]
    %v168 = vld [vmem:[#allocation8 + $0x288] sm:$0xff]
    %v169 = vld [vmem:[#allocation8 + $0x290] sm:$0xff]
    %v170 = vld [vmem:[#allocation8 + $0x298] sm:$0xff]
    %v171 = vld [vmem:[#allocation8 + $0x2a0] sm:$0xff]
    %v172 = vld [vmem:[#allocation8 + $0x2a8] sm:$0xff]
    %v173 = vld [vmem:[#allocation8 + $0x2b0] sm:$0xff]
    %v174 = vld [vmem:[#allocation8 + $0x2b8] sm:$0xff]
    %v175 = vld [vmem:[#allocation8 + $0x2c0] sm:$0xff]
    %v176 = vld [vmem:[#allocation8 + $0x2c8] sm:$0xff]
    %v177 = vld [vmem:[#allocation8 + $0x2d0] sm:$0xff]
    %v178 = vld [vmem:[#allocation8 + $0x2d8] sm:$0xff]
    %v179 = vld [vmem:[#allocation8 + $0x2e0] sm:$0xff]
    %v180 = vld [vmem:[#allocation8 + $0x2e8] sm:$0xff]
    %v181 = vld [vmem:[#allocation8 + $0x2f0] sm:$0xff]
    %v182 = vld [vmem:[#allocation8 + $0x2f8] sm:$0xff]
    %v183 = vld [vmem:[#allocation8 + $0x300] sm:$0xff]
    %v184 = vld [vmem:[#allocation8 + $0x308] sm:$0xff]
    %v185 = vld [vmem:[#allocation8 + $0x310] sm:$0xff]
    %v186 = vld [vmem:[#allocation8 + $0x318] sm:$0xff]
    %v187 = vld [vmem:[#allocation8 + $0x320] sm:$0xff]
    %v188 = vld [vmem:[#allocation8 + $0x328] sm:$0xff]
    %v189 = vld [vmem:[#allocation8 + $0x330] sm:$0xff]
    %v190 = vld [vmem:[#allocation8 + $0x338] sm:$0xff]
    %v191 = vld [vmem:[#allocation8 + $0x340] sm:$0xff]
    %v192 = vld [vmem:[#allocation8 + $0x348] sm:$0xff]
    %v193 = vld [vmem:[#allocation8 + $0x350] sm:$0xff]
    %v194 = vld [vmem:[#allocation8 + $0x358] sm:$0xff]
    %v195 = vld [vmem:[#allocation8 + $0x360] sm:$0xff]
    %v196 = vld [vmem:[#allocation8 + $0x368] sm:$0xff]
    %v197 = vld [vmem:[#allocation8 + $0x370] sm:$0xff]
    %v198 = vld [vmem:[#allocation8 + $0x378] sm:$0xff]
    %v199 = vld [vmem:[#allocation8 + $0x380] sm:$0xff]
    %v200 = vld [vmem:[#allocation8 + $0x388] sm:$0xff]
    %v201 = vld [vmem:[#allocation8 + $0x390] sm:$0xff]
    %v202 = vld [vmem:[#allocation8 + $0x398] sm:$0xff]
    %v203 = vld [vmem:[#allocation8 + $0x3a0] sm:$0xff]
    %v204 = vld [vmem:[#allocation8 + $0x3a8] sm:$0xff]
    %v205 = vld [vmem:[#allocation8 + $0x3b0] sm:$0xff]
    %v206 = vld [vmem:[#allocation8 + $0x3b8] sm:$0xff]
    %v207 = vld [vmem:[#allocation8 + $0x3c0] sm:$0xff]
    %v208 = vld [vmem:[#allocation8 + $0x3c8] sm:$0xff]
    %v209 = vld [vmem:[#allocation8 + $0x3d0] sm:$0xff]
    %v210 = vld [vmem:[#allocation8 + $0x3d8] sm:$0xff]
    %v211 = vld [vmem:[#allocation8 + $0x3e0] sm:$0xff]
    %v212 = vld [vmem:[#allocation8 + $0x3e8] sm:$0xff]
    %v213 = vld [vmem:[#allocation8 + $0x3f0] sm:$0xff]
    %v214 = vld [vmem:[#allocation8 + $0x3f8] sm:$0xff]
    %v215 = vld [vmem:[#allocation8 + $0x400] sm:$0xff]
    %v216 = vld [vmem:[#allocation8 + $0x408] sm:$0xff]
    %v217 = vld [vmem:[#allocation8 + $0x410] sm:$0xff]
    %v218 = vld [vmem:[#allocation8 + $0x418] sm:$0xff]
    %v219 = vld [vmem:[#allocation8 + $0x420] sm:$0xff]
    %v220 = vld [vmem:[#allocation8 + $0x428] sm:$0xff]
    %v221 = vld [vmem:[#allocation8 + $0x430] sm:$0xff]
    %v222 = vld [vmem:[#allocation8 + $0x438] sm:$0xff]
    %v223 = vld [vmem:[#allocation8 + $0x440] sm:$0xff]
    %v224 = vld [vmem:[#allocation8 + $0x448] sm:$0xff]
    %v225 = vld [vmem:[#allocation8 + $0x450] sm:$0xff]
    %v226 = vld [vmem:[#allocation8 + $0x458] sm:$0xff]
    %v227 = vld [vmem:[#allocation8 + $0x460] sm:$0xff]
    %v228 = vld [vmem:[#allocation8 + $0x468] sm:$0xff]
    %v229 = vld [vmem:[#allocation8 + $0x470] sm:$0xff]
    %v230 = vld [vmem:[#allocation8 + $0x478] sm:$0xff]
    %v231 = vld [vmem:[#allocation8 + $0x480] sm:$0xff]
    %v232 = vld [vmem:[#allocation8 + $0x488] sm:$0xff]
    %v233 = vld [vmem:[#allocation8 + $0x490] sm:$0xff]
    %v234 = vld [vmem:[#allocation8 + $0x498] sm:$0xff]
    %v235 = vld [vmem:[#allocation8 + $0x4a0] sm:$0xff]
    %v236 = vld [vmem:[#allocation8 + $0x4a8] sm:$0xff]
    %v237 = vld [vmem:[#allocation8 + $0x4b0] sm:$0xff]
    %v238 = vld [vmem:[#allocation8 + $0x4b8] sm:$0xff]
    %v239 = vld [vmem:[#allocation8 + $0x4c0] sm:$0xff]
    %v240 = vld [vmem:[#allocation8 + $0x4c8] sm:$0xff]
    %v241 = vld [vmem:[#allocation8 + $0x4d0] sm:$0xff]
    %v242 = vld [vmem:[#allocation8 + $0x4d8] sm:$0xff]
    %v243 = vld [vmem:[#allocation8 + $0x4e0] sm:$0xff]
    %v244 = vld [vmem:[#allocation8 + $0x4e8] sm:$0xff]
    %v245 = vld [vmem:[#allocation8 + $0x4f0] sm:$0xff]
    %v246 = vld [vmem:[#allocation8 + $0x4f8] sm:$0xff]
    %v247 = vld [vmem:[#allocation8 + $0x500] sm:$0xff]
    %v248 = vld [vmem:[#allocation8 + $0x508] sm:$0xff]
    %v249 = vld [vmem:[#allocation8 + $0x510] sm:$0xff]
    %v250 = vld [vmem:[#allocation8 + $0x518] sm:$0xff]
    %v251 = vld [vmem:[#allocation8 + $0x520] sm:$0xff]
    %v252 = vld [vmem:[#allocation8 + $0x528] sm:$0xff]
    %v253 = vld [vmem:[#allocation8 + $0x530] sm:$0xff]
    %v254 = vld [vmem:[#allocation8 + $0x538] sm:$0xff]
    %v255 = vld [vmem:[#allocation8 + $0x540] sm:$0xff]
    %v256 = vld [vmem:[#allocation8 + $0x548] sm:$0xff]
    %v257 = vld [vmem:[#allocation8 + $0x550] sm:$0xff]
    %v258 = vld [vmem:[#allocation8 + $0x558] sm:$0xff]
    %v259 = vld [vmem:[#allocation8 + $0x560] sm:$0xff]
    %v260 = vld [vmem:[#allocation8 + $0x568] sm:$0xff]
    %v261 = vld [vmem:[#allocation8 + $0x570] sm:$0xff]
    %v262 = vld [vmem:[#allocation8 + $0x578] sm:$0xff]
    %v263 = vld [vmem:[#allocation8 + $0x580] sm:$0xff]
    %v264 = vld [vmem:[#allocation8 + $0x588] sm:$0xff]
    %v265 = vld [vmem:[#allocation8 + $0x590] sm:$0xff]
    %v266 = vld [vmem:[#allocation8 + $0x598] sm:$0xff]
    %v267 = vld [vmem:[#allocation8 + $0x5a0] sm:$0xff]
    %v268 = vld [vmem:[#allocation8 + $0x5a8] sm:$0xff]
    %v269 = vld [vmem:[#allocation8 + $0x5b0] sm:$0xff]
    %v270 = vld [vmem:[#allocation8 + $0x5b8] sm:$0xff]
    %v271 = vld [vmem:[#allocation8 + $0x5c0] sm:$0xff]
    %v272 = vld [vmem:[#allocation8 + $0x5c8] sm:$0xff]
    %v273 = vld [vmem:[#allocation8 + $0x5d0] sm:$0xff]
    %v274 = vld [vmem:[#allocation8 + $0x5d8] sm:$0xff]
    %v275 = vld [vmem:[#allocation8 + $0x5e0] sm:$0xff]
    %v276 = vld [vmem:[#allocation8 + $0x5e8] sm:$0xff]
    %v277 = vld [vmem:[#allocation8 + $0x5f0] sm:$0xff]
    %v278 = vld [vmem:[#allocation8 + $0x5f8] sm:$0xff]
    %v279 = vld [vmem:[#allocation8 + $0x600] sm:$0xff]
    %v280 = vld [vmem:[#allocation8 + $0x608] sm:$0xff]
    %v281 = vld [vmem:[#allocation8 + $0x610] sm:$0xff]
    %v282 = vld [vmem:[#allocation8 + $0x618] sm:$0xff]
    %v283 = vld [vmem:[#allocation8 + $0x620] sm:$0xff]
    %v284 = vld [vmem:[#allocation8 + $0x628] sm:$0xff]
    %v285 = vld [vmem:[#allocation8 + $0x630] sm:$0xff]
    %v286 = vld [vmem:[#allocation8 + $0x638] sm:$0xff]
    %v287 = vld [vmem:[#allocation8 + $0x640] sm:$0xff]
    %v288 = vld [vmem:[#allocation8 + $0x648] sm:$0xff]
    %v289 = vld [vmem:[#allocation8 + $0x650] sm:$0xff]
    %v290 = vld [vmem:[#allocation8 + $0x658] sm:$0xff]
    %v291 = vld [vmem:[#allocation8 + $0x660] sm:$0xff]
    %v292 = vld [vmem:[#allocation8 + $0x668] sm:$0xff]
    %v293 = vld [vmem:[#allocation8 + $0x670] sm:$0xff]
    %v294 = vld [vmem:[#allocation8 + $0x678] sm:$0xff]
    %v295 = vld [vmem:[#allocation8 + $0x680] sm:$0xff]
    %v296 = vld [vmem:[#allocation8 + $0x688] sm:$0xff]
    %v297 = vld [vmem:[#allocation8 + $0x690] sm:$0xff]
    %v298 = vld [vmem:[#allocation8 + $0x698] sm:$0xff]
    %v299 = vld [vmem:[#allocation8 + $0x6a0] sm:$0xff]
    %v300 = vld [vmem:[#allocation8 + $0x6a8] sm:$0xff]
    %v301 = vld [vmem:[#allocation8 + $0x6b0] sm:$0xff]
    %v302 = vld [vmem:[#allocation8 + $0x6b8] sm:$0xff]
    %v303 = vld [vmem:[#allocation8 + $0x6c0] sm:$0xff]
    %v304 = vld [vmem:[#allocation8 + $0x6c8] sm:$0xff]
    %v305 = vld [vmem:[#allocation8 + $0x6d0] sm:$0xff]
    %v306 = vld [vmem:[#allocation8 + $0x6d8] sm:$0xff]
    %v307 = vld [vmem:[#allocation8 + $0x6e0] sm:$0xff]
    %v308 = vld [vmem:[#allocation8 + $0x6e8] sm:$0xff]
    %v309 = vld [vmem:[#allocation8 + $0x6f0] sm:$0xff]
    %v310 = vld [vmem:[#allocation8 + $0x6f8] sm:$0xff]
    %v311 = vld [vmem:[#allocation8 + $0x700] sm:$0xff]
    %v312 = vld [vmem:[#allocation8 + $0x708] sm:$0xff]
    %v313 = vld [vmem:[#allocation8 + $0x710] sm:$0xff]
    %v314 = vld [vmem:[#allocation8 + $0x718] sm:$0xff]
    %v315 = vld [vmem:[#allocation8 + $0x720] sm:$0xff]
    %v316 = vld [vmem:[#allocation8 + $0x728] sm:$0xff]
    %v317 = vld [vmem:[#allocation8 + $0x730] sm:$0xff]
    %v318 = vld [vmem:[#allocation8 + $0x738] sm:$0xff]
    %v319 = vld [vmem:[#allocation8 + $0x740] sm:$0xff]
    %v320 = vld [vmem:[#allocation8 + $0x748] sm:$0xff]
    %v321 = vld [vmem:[#allocation8 + $0x750] sm:$0xff]
    %v322 = vld [vmem:[#allocation8 + $0x758] sm:$0xff]
    %v323 = vld [vmem:[#allocation8 + $0x760] sm:$0xff]
    %v324 = vld [vmem:[#allocation8 + $0x768] sm:$0xff]
    %v325 = vld [vmem:[#allocation8 + $0x770] sm:$0xff]
    %v326 = vld [vmem:[#allocation8 + $0x778] sm:$0xff]
    %v327 = vld [vmem:[#allocation8 + $0x780] sm:$0xff]
    %v328 = vld [vmem:[#allocation8 + $0x788] sm:$0xff]
    %v329 = vld [vmem:[#allocation8 + $0x790] sm:$0xff]
    %v330 = vld [vmem:[#allocation8 + $0x798] sm:$0xff]
    %v331 = vld [vmem:[#allocation8 + $0x7a0] sm:$0xff]
    %v332 = vld [vmem:[#allocation8 + $0x7a8] sm:$0xff]
    %v333 = vld [vmem:[#allocation8 + $0x7b0] sm:$0xff]
    %v334 = vld [vmem:[#allocation8 + $0x7b8] sm:$0xff]
    %v335 = vld [vmem:[#allocation8 + $0x7c0] sm:$0xff]
    %v336 = vld [vmem:[#allocation8 + $0x7c8] sm:$0xff]
    %v337 = vld [vmem:[#allocation8 + $0x7d0] sm:$0xff]
    %v338 = vld [vmem:[#allocation8 + $0x7d8] sm:$0xff]
    %v339 = vld [vmem:[#allocation8 + $0x7e0] sm:$0xff]
    %v340 = vld [vmem:[#allocation8 + $0x7e8] sm:$0xff]
    %v341 = vld [vmem:[#allocation8 + $0x7f0] sm:$0xff]
    %v342 = vld [vmem:[#allocation8 + $0x7f8] sm:$0xff]
    %343 = vmatprep.subr.mxu0 %v148
    %344 = vmatpush1.msra.mxu0 %v147
    %345 = vmatprep.subr.mxu0 %v144
    %346 = vmatpush1.msra.mxu0 %v143
    %347 = vmatprep.subr.mxu0 %v140
    %348 = vmatpush1.msra.mxu0 %v139
    %349 = vmatprep.subr.mxu0 %v136
    %350 = vmatpush1.msra.mxu0 %v135
    %351 = vmatprep.subr.mxu0 %v132
    %352 = vmatpush1.msra.mxu0 %v131
    %353 = vmatprep.subr.mxu0 %v128
    %354 = vmatpush1.msra.mxu0 %v127
    %355 = vmatprep.subr.mxu0 %v124
    %356 = vmatpush1.msra.mxu0 %v123
    %357 = vmatprep.subr.mxu0 %v120
    %358 = vmatpush1.msra.mxu0 %v119
    %359 = vmatprep.subr.mxu0 %v116
    %360 = vmatpush1.msra.mxu0 %v115
    %361 = vmatprep.subr.mxu0 %v112
    %362 = vmatpush1.msra.mxu0 %v111
    %363 = vmatprep.subr.mxu0 %v108
    %364 = vmatpush1.msra.mxu0 %v107
    %365 = vmatprep.subr.mxu0 %v104
    %366 = vmatpush1.msra.mxu0 %v103
    %367 = vmatprep.subr.mxu0 %v100
    %368 = vmatpush1.msra.mxu0 %v99
    %369 = vmatprep.subr.mxu0 %v96
    %370 = vmatpush1.msra.mxu0 %v95
    %371 = vmatprep.subr.mxu0 %v92
    %372 = vmatpush1.msra.mxu0 %v91
    %373 = vmatprep.subr.mxu0 %v88
    %374 = vmatpush1.msra.mxu0 %v87
    %375 = vmatprep.subr.mxu0 %v212
    %376 = vmatpush2.msra.mxu0 %v211
    %377 = vmatprep.subr.mxu0 %v208
    %378 = vmatpush2.msra.mxu0 %v207
    %379 = vmatprep.subr.mxu0 %v204
    %380 = vmatpush2.msra.mxu0 %v203
    %381 = vmatprep.subr.mxu0 %v200
    %382 = vmatpush2.msra.mxu0 %v199
    %383 = vmatprep.subr.mxu0 %v196
    %384 = vmatpush2.msra.mxu0 %v195
    %385 = vmatprep.subr.mxu0 %v192
    %386 = vmatpush2.msra.mxu0 %v191
    %387 = vmatprep.subr.mxu0 %v188
    %388 = vmatpush2.msra.mxu0 %v187
    %389 = vmatprep.subr.mxu0 %v184
    %390 = vmatpush2.msra.mxu0 %v183
    %391 = vmatprep.subr.mxu0 %v180
    %392 = vmatpush2.msra.mxu0 %v179
    %393 = vmatprep.subr.mxu0 %v176
    %394 = vmatpush2.msra.mxu0 %v175
    %395 = vmatprep.subr.mxu0 %v172
    %396 = vmatpush2.msra.mxu0 %v171
    %397 = vmatprep.subr.mxu0 %v168
    %398 = vmatpush2.msra.mxu0 %v167
    %399 = vmatprep.subr.mxu0 %v164
    %400 = vmatpush2.msra.mxu0 %v163
    %401 = vmatprep.subr.mxu0 %v160
    %402 = vmatpush2.msra.mxu0 %v159
    %403 = vmatprep.subr.mxu0 %v156
    %404 = vmatpush2.msra.mxu0 %v155
    %405 = vmatprep.subr.mxu0 %v152
    %406 = vmatpush2.msra.mxu0 %v151
    %407 = vmatprep.mubr.f32.mxu0 %v80
    %408 = vmatmul.mubr.f32.gmra.mxu0 %v79
    %v409 = vpop.f32.mrf.mxu0
    %v410 = vadd.f32 0.0, %v409
    %v411 = vpop.f32.mrf.mxu0
    %v412 = vadd.f32 0.0, %v411
    %413 = vdwg.mxu0
    %414 = vmatprep.subr.mxu0 %v276
    %415 = vmatpush1.msra.mxu0 %v275
    %416 = vmatprep.subr.mxu0 %v272
    %417 = vmatpush1.msra.mxu0 %v271
    %418 = vmatprep.subr.mxu0 %v268
    %419 = vmatpush1.msra.mxu0 %v267
    %420 = vmatprep.subr.mxu0 %v264
    %421 = vmatpush1.msra.mxu0 %v263
    %422 = vmatprep.subr.mxu0 %v260
    %423 = vmatpush1.msra.mxu0 %v259
    %424 = vmatprep.subr.mxu0 %v256
    %425 = vmatpush1.msra.mxu0 %v255
    %426 = vmatprep.subr.mxu0 %v252
    %427 = vmatpush1.msra.mxu0 %v251
    %428 = vmatprep.subr.mxu0 %v248
    %429 = vmatpush1.msra.mxu0 %v247
    %430 = vmatprep.subr.mxu0 %v244
    %431 = vmatpush1.msra.mxu0 %v243
    %432 = vmatprep.subr.mxu0 %v240
    %433 = vmatpush1.msra.mxu0 %v239
    %434 = vmatprep.subr.mxu0 %v236
    %435 = vmatpush1.msra.mxu0 %v235
    %436 = vmatprep.subr.mxu0 %v232
    %437 = vmatpush1.msra.mxu0 %v231
    %438 = vmatprep.subr.mxu0 %v228
    %439 = vmatpush1.msra.mxu0 %v227
    %440 = vmatprep.subr.mxu0 %v224
    %441 = vmatpush1.msra.mxu0 %v223
    %442 = vmatprep.subr.mxu0 %v220
    %443 = vmatpush1.msra.mxu0 %v219
    %444 = vmatprep.subr.mxu0 %v216
    %445 = vmatpush1.msra.mxu0 %v215
    %446 = vmatprep.subr.mxu0 %v340
    %447 = vmatpush2.msra.mxu0 %v339
    %448 = vmatprep.subr.mxu0 %v336
    %449 = vmatpush2.msra.mxu0 %v335
    %450 = vmatprep.subr.mxu0 %v332
    %451 = vmatpush2.msra.mxu0 %v331
    %452 = vmatprep.subr.mxu0 %v328
    %453 = vmatpush2.msra.mxu0 %v327
    %454 = vmatprep.subr.mxu0 %v324
    %455 = vmatpush2.msra.mxu0 %v323
    %456 = vmatprep.subr.mxu0 %v320
    %457 = vmatpush2.msra.mxu0 %v319
    %458 = vmatprep.subr.mxu0 %v316
    %459 = vmatpush2.msra.mxu0 %v315
    %460 = vmatprep.subr.mxu0 %v312
    %461 = vmatpush2.msra.mxu0 %v311
    %462 = vmatprep.subr.mxu0 %v308
    %463 = vmatpush2.msra.mxu0 %v307
    %464 = vmatprep.subr.mxu0 %v304
    %465 = vmatpush2.msra.mxu0 %v303
    %466 = vmatprep.subr.mxu0 %v300
    %467 = vmatpush2.msra.mxu0 %v299
    %468 = vmatprep.subr.mxu0 %v296
    %469 = vmatpush2.msra.mxu0 %v295
    %470 = vmatprep.subr.mxu0 %v292
    %471 = vmatpush2.msra.mxu0 %v291
    %472 = vmatprep.subr.mxu0 %v288
    %473 = vmatpush2.msra.mxu0 %v287
    %474 = vmatprep.subr.mxu0 %v284
    %475 = vmatpush2.msra.mxu0 %v283
    %476 = vmatprep.subr.mxu0 %v280
    %477 = vmatpush2.msra.mxu0 %v279
    %478 = vmatprep.mubr.f32.mxu0 %v86
    %479 = vmatmul.mubr.f32.gmra.mxu0 %v85
    %v480 = vpop.f32.mrf.mxu0
    %v481 = vadd.f32 %v410, %v480
    %v482 = vpop.f32.mrf.mxu0
    %v483 = vadd.f32 %v412, %v482
    %484 = vdwg.mxu0
    %485 = vmatprep.subr.mxu0 %v150
    %486 = vmatpush1.msra.mxu0 %v149
    %487 = vmatprep.subr.mxu0 %v146
    %488 = vmatpush1.msra.mxu0 %v145
    %489 = vmatprep.subr.mxu0 %v142
    %490 = vmatpush1.msra.mxu0 %v141
    %491 = vmatprep.subr.mxu0 %v138
    %492 = vmatpush1.msra.mxu0 %v137
    %493 = vmatprep.subr.mxu0 %v134
    %494 = vmatpush1.msra.mxu0 %v133
    %495 = vmatprep.subr.mxu0 %v130
    %496 = vmatpush1.msra.mxu0 %v129
    %497 = vmatprep.subr.mxu0 %v126
    %498 = vmatpush1.msra.mxu0 %v125
    %499 = vmatprep.subr.mxu0 %v122
    %500 = vmatpush1.msra.mxu0 %v121
    %501 = vmatprep.subr.mxu0 %v118
    %502 = vmatpush1.msra.mxu0 %v117
    %503 = vmatprep.subr.mxu0 %v114
    %504 = vmatpush1.msra.mxu0 %v113
    %505 = vmatprep.subr.mxu0 %v110
    %506 = vmatpush1.msra.mxu0 %v109
    %507 = vmatprep.subr.mxu0 %v106
    %508 = vmatpush1.msra.mxu0 %v105
    %509 = vmatprep.subr.mxu0 %v102
    %510 = vmatpush1.msra.mxu0 %v101
    %511 = vmatprep.subr.mxu0 %v98
    %512 = vmatpush1.msra.mxu0 %v97
    %513 = vmatprep.subr.mxu0 %v94
    %514 = vmatpush1.msra.mxu0 %v93
    %515 = vmatprep.subr.mxu0 %v90
    %516 = vmatpush1.msra.mxu0 %v89
    %517 = vmatprep.subr.mxu0 %v214
    %518 = vmatpush2.msra.mxu0 %v213
    %519 = vmatprep.subr.mxu0 %v210
    %520 = vmatpush2.msra.mxu0 %v209
    %521 = vmatprep.subr.mxu0 %v206
    %522 = vmatpush2.msra.mxu0 %v205
    %523 = vmatprep.subr.mxu0 %v202
    %524 = vmatpush2.msra.mxu0 %v201
    %525 = vmatprep.subr.mxu0 %v198
    %526 = vmatpush2.msra.mxu0 %v197
    %527 = vmatprep.subr.mxu0 %v194
    %528 = vmatpush2.msra.mxu0 %v193
    %529 = vmatprep.subr.mxu0 %v190
    %530 = vmatpush2.msra.mxu0 %v189
    %531 = vmatprep.subr.mxu0 %v186
    %532 = vmatpush2.msra.mxu0 %v185
    %533 = vmatprep.subr.mxu0 %v182
    %534 = vmatpush2.msra.mxu0 %v181
    %535 = vmatprep.subr.mxu0 %v178
    %536 = vmatpush2.msra.mxu0 %v177
    %537 = vmatprep.subr.mxu0 %v174
    %538 = vmatpush2.msra.mxu0 %v173
    %539 = vmatprep.subr.mxu0 %v170
    %540 = vmatpush2.msra.mxu0 %v169
    %541 = vmatprep.subr.mxu0 %v166
    %542 = vmatpush2.msra.mxu0 %v165
    %543 = vmatprep.subr.mxu0 %v162
    %544 = vmatpush2.msra.mxu0 %v161
    %545 = vmatprep.subr.mxu0 %v158
    %546 = vmatpush2.msra.mxu0 %v157
    %547 = vmatprep.subr.mxu0 %v154
    %548 = vmatpush2.msra.mxu0 %v153
    %549 = vmatprep.mubr.f32.mxu0 %v80
    %550 = vmatmul.mubr.f32.gmra.mxu0 %v79
    %v551 = vpop.f32.mrf.mxu0
    %v552 = vadd.f32 0.0, %v551
    %v553 = vpop.f32.mrf.mxu0
    %v554 = vadd.f32 0.0, %v553
    %555 = vdwg.mxu0
    %556 = vmatprep.subr.mxu0 %v278
    %557 = vmatpush1.msra.mxu0 %v277
    %558 = vmatprep.subr.mxu0 %v274
    %559 = vmatpush1.msra.mxu0 %v273
    %560 = vmatprep.subr.mxu0 %v270
    %561 = vmatpush1.msra.mxu0 %v269
    %562 = vmatprep.subr.mxu0 %v266
    %563 = vmatpush1.msra.mxu0 %v265
    %564 = vmatprep.subr.mxu0 %v262
    %565 = vmatpush1.msra.mxu0 %v261
    %566 = vmatprep.subr.mxu0 %v258
    %567 = vmatpush1.msra.mxu0 %v257
    %568 = vmatprep.subr.mxu0 %v254
    %569 = vmatpush1.msra.mxu0 %v253
    %570 = vmatprep.subr.mxu0 %v250
    %571 = vmatpush1.msra.mxu0 %v249
    %572 = vmatprep.subr.mxu0 %v246
    %573 = vmatpush1.msra.mxu0 %v245
    %574 = vmatprep.subr.mxu0 %v242
    %575 = vmatpush1.msra.mxu0 %v241
    %576 = vmatprep.subr.mxu0 %v238
    %577 = vmatpush1.msra.mxu0 %v237
    %578 = vmatprep.subr.mxu0 %v234
    %579 = vmatpush1.msra.mxu0 %v233
    %580 = vmatprep.subr.mxu0 %v230
    %581 = vmatpush1.msra.mxu0 %v229
    %582 = vmatprep.subr.mxu0 %v226
    %583 = vmatpush1.msra.mxu0 %v225
    %584 = vmatprep.subr.mxu0 %v222
    %585 = vmatpush1.msra.mxu0 %v221
    %586 = vmatprep.subr.mxu0 %v218
    %587 = vmatpush1.msra.mxu0 %v217
    %588 = vmatprep.subr.mxu0 %v342
    %589 = vmatpush2.msra.mxu0 %v341
    %590 = vmatprep.subr.mxu0 %v338
    %591 = vmatpush2.msra.mxu0 %v337
    %592 = vmatprep.subr.mxu0 %v334
    %593 = vmatpush2.msra.mxu0 %v333
    %594 = vmatprep.subr.mxu0 %v330
    %595 = vmatpush2.msra.mxu0 %v329
    %596 = vmatprep.subr.mxu0 %v326
    %597 = vmatpush2.msra.mxu0 %v325
    %598 = vmatprep.subr.mxu0 %v322
    %599 = vmatpush2.msra.mxu0 %v321
    %600 = vmatprep.subr.mxu0 %v318
    %601 = vmatpush2.msra.mxu0 %v317
    %602 = vmatprep.subr.mxu0 %v314
    %603 = vmatpush2.msra.mxu0 %v313
    %604 = vmatprep.subr.mxu0 %v310
    %605 = vmatpush2.msra.mxu0 %v309
    %606 = vmatprep.subr.mxu0 %v306
    %607 = vmatpush2.msra.mxu0 %v305
    %608 = vmatprep.subr.mxu0 %v302
    %609 = vmatpush2.msra.mxu0 %v301
    %610 = vmatprep.subr.mxu0 %v298
    %611 = vmatpush2.msra.mxu0 %v297
    %612 = vmatprep.subr.mxu0 %v294
    %613 = vmatpush2.msra.mxu0 %v293
    %614 = vmatprep.subr.mxu0 %v290
    %615 = vmatpush2.msra.mxu0 %v289
    %616 = vmatprep.subr.mxu0 %v286
    %617 = vmatpush2.msra.mxu0 %v285
    %618 = vmatprep.subr.mxu0 %v282
    %619 = vmatpush2.msra.mxu0 %v281
    %620 = vmatprep.mubr.f32.mxu0 %v86
    %621 = vmatmul.mubr.f32.gmra.mxu0 %v85
    %v622 = vpop.f32.mrf.mxu0
    %v623 = vadd.f32 %v552, %v622
    %v624 = vpop.f32.mrf.mxu0
    %v625 = vadd.f32 %v554, %v624
    %626 = vdwg.mxu0
    %v627 = vld [vmem:[#allocation7] sm:$0xff]
    %v628 = vld [vmem:[#allocation7 + $0x8] sm:$0xff]
    %v629 = vld [vmem:[#allocation7 + $0x10] sm:$0xff]
    %v630 = vld [vmem:[#allocation7 + $0x18] sm:$0xff]
    %v631 = vmul.f32 %v481, %v627
    %v632 = vmul.f32 %v483, %v628
    %v633 = vmul.f32 %v623, %v629
    %v634 = vmul.f32 %v625, %v630
    %635 = vst [vmem:[#allocation10] sm:$0xff] %v631
    %636 = vst [vmem:[#allocation10 + $0x8] sm:$0xff] %v632
    %637 = vst [vmem:[#allocation10 + $0x10] sm:$0xff] %v633
    %638 = vst [vmem:[#allocation10 + $0x18] sm:$0xff] %v634
    // Predicated region
    $region34: #{tpu_custom_call.1} parent=1 // pred_check
      _
    $region35: #{tpu_custom_call.1} parent=1 // pred_check_branch
      %640 = sbr.rel (0) target = $region37
    $region36: #{tpu_custom_call.1} parent=1 // pred_region
      %s642 = ssub.s32 512, 512
      %643 = vsyncadd [#allocation4], %s642
      %s645 = sshll.u32 [#allocation10], 4
      %s646 = int_to_ptr.vmem [resolvable:$true] %s645
      %648 = dma.vmem_to_hbm [thread:$0]  %s646, 512, %s4, [#allocation4]
    $region37: #{tpu_custom_call.1} parent=1 // pred_fallthru
      _
    // Predicated region
    $region38: #{tpu_custom_call.1} parent=1 // pred_check
      _
    $region39: #{tpu_custom_call.1} parent=1 // pred_check_branch
      %650 = sbr.rel (0) target = $region41
    $region40: #{tpu_custom_call.1} parent=1 // pred_region
      %651 = dma.done [#allocation4], 512
    $region41: #{tpu_custom_call.1} parent=1 // pred_fallthru
      _
    %652 = vsyncpa [#allocation3], 1
    %653 = vsyncpa [#allocation6], 1
    %654 = vsyncpa [#allocation9], 1
    %655 = vsyncpa [#allocation4], 1

</llo_original>
